<compile_context>
chip_gen: v5e
topology: v5e:2x2
jax: 0.10.0
libtpu: 0.0.40
codegen_flags: <defaults>
</compile_context>

<pallas_src>
import numpy as np
import jax
import jax.numpy as jnp
from jax import lax
from jax.experimental import pallas as pl
from jax.experimental.pallas import tpu as pltpu


def _make_kernel(M: int):
    BIG = 1.0e30

    def kernel(probs_row_ref, probs_col_ref, labels_ref, out_ref):
        c = pl.program_id(0)

        s_row = probs_row_ref[0]        # (1, M) per-class scores, lane-major
        s_col = probs_col_ref[0]        # (M, 1) same scores, sublane-major
        labels = labels_ref[...]        # (1, M) int32 (pads are -1)

        t_row = jnp.where(labels == c, 1.0, 0.0)          # (1, M) binary targets

        idx_lane = lax.broadcasted_iota(jnp.int32, (1, M), 1)   # original sample index j
        ia = lax.broadcasted_iota(jnp.int32, (M, M), 0)         # k (sublane axis)
        ib = lax.broadcasted_iota(jnp.int32, (M, M), 1)         # j (lane axis)

        # ---------------- phase 1: stable descending sort statistics ----------------
        # pairwise grids [k, j]: how sample k relates to sample j
        gt = s_col > s_row                          # s[k] >  s[j]
        eq = s_col == s_row                         # s[k] == s[j]
        before = gt | (eq & (ia < ib))              # k sorts strictly before j
        before_f = jnp.where(before, 1.0, 0.0)      # exact 0/1 -> MXU-exact at any precision

        # one MXU matmul: row 0 (ones) -> rank (sorted slot), row 1 (t) -> positives before j
        sub8 = lax.broadcasted_iota(jnp.int32, (8, M), 0)
        lhs = jnp.where(sub8 == 0, 1.0, jnp.where(sub8 == 1, t_row, 0.0))     # (8, M)
        counts = jnp.dot(lhs, before_f, preferred_element_type=jnp.float32)   # (8, M)
        rank = counts[0:1, :]                       # (1, M) exact small ints
        tps = counts[1:2, :] + t_row                # cumulative true positives at this slot

        # distinct threshold <=> no later sample (larger original index) with equal score
        tie_after = jnp.sum(jnp.where(eq & (ia > ib), 1.0, 0.0), axis=0, keepdims=True)
        distinct = tie_after == 0.0

        tp_total = jnp.sum(t_row, axis=1, keepdims=True)        # (1, 1)
        precision = tps / (rank + 1.0)              # tps / (tps + fps); exact small-int ratio
        recall = tps / tp_total                     # NaN if class absent (torch parity)

        # cut at the first distinct point reaching full recall
        full = distinct & (tps == tp_total)
        i_last = jnp.min(jnp.where(full, rank, float(M)), axis=1, keepdims=True)
        valid = distinct & (rank <= i_last)

        # curve points: valid thresholds, appended (1, 0) point hosted by the last pad,
        # zero-area sentinels (x=2, y=0) elsewhere
        is_append = idx_lane == (M - 1)
        x_row = jnp.where(is_append, 1.0, jnp.where(valid, precision, 2.0))
        y_row = jnp.where(is_append, 0.0, jnp.where(valid, recall, 0.0))
        # tie key for auc(reorder=True): stable ascending-precision sort keeps curve order
        # (descending sorted-slot, appended point last)  ->  "k after j" iff arank_k < arank_j
        arank_row = jnp.where(is_append, -1.0, rank)

        # ---------------- phase 2: trapezoid area of the precision-sorted curve -------------
        # exact lane->sublane relayout (values feed float-equality tie tests, so it must be
        # bitwise exact; diagonal select is exact and guaranteed to lower on all generations)
        diag = ia == ib

        def row_to_col(row):                       # (1, M) -> (M, 1), bitwise exact
            return jnp.sum(jnp.where(diag, row, 0.0), axis=1, keepdims=True)

        x_col = row_to_col(x_row)
        arank_col = row_to_col(arank_row)

        after = (x_col > x_row) | ((x_col == x_row) & (arank_col < arank_row))  # k after j
        before2 = (~after) & (ia != ib)                                          # k before j

        x_succ = jnp.min(jnp.where(after, x_col, BIG), axis=0, keepdims=True)    # (1, M)
        x_pred = jnp.max(jnp.where(before2, x_col, -BIG), axis=0, keepdims=True)
        x_succ = jnp.where(x_succ > 0.5 * BIG, x_row, x_succ)   # last point: succ := itself
        x_pred = jnp.where(x_pred < -0.5 * BIG, x_row, x_pred)  # first point: pred := itself

        # point-centred trapezoid rule: area = 1/2 * sum_p y_p * (x_succ(p) - x_pred(p))
        area = 0.5 * jnp.sum(y_row * (x_succ - x_pred), axis=1, keepdims=True)   # (1, 1)

        out_ref[...] = jnp.broadcast_to(jnp.reshape(area, (1, 1, 1)), (1, 1, 128))

    return kernel


def multi_auprc(logits, labels, num_classes):
    """Pallas implementation of MultiAUPRC.forward. Returns shape (1,) float32."""
    N, C = logits.shape
    assert C == num_classes
    M = ((N + 1 + 127) // 128) * 128          # >= N+1, lane/MXU aligned
    pad = M - N

    # softmax hoisted out of the kernel (computed once, not once per class)
    probs = jax.nn.softmax(logits.astype(jnp.float32), axis=1)          # (N, C)
    probs_t = jnp.concatenate(
        [jnp.transpose(probs), jnp.full((C, pad), -1.0, jnp.float32)], axis=1)  # (C, M)
    probs_row = probs_t.reshape(C, 1, M)
    probs_col = probs_t.reshape(C, M, 1)
    labels_row = jnp.concatenate(
        [labels.astype(jnp.int32), jnp.full((pad,), -1, jnp.int32)]).reshape(1, M)

    kernel = _make_kernel(M)
    out = pl.pallas_call(
        kernel,
        out_shape=jax.ShapeDtypeStruct((C, 1, 128), jnp.float32),
        grid_spec=pltpu.PrefetchScalarGridSpec(
            num_scalar_prefetch=0,
            grid=(C,),                                        # one independent class per step
            in_specs=[
                pl.BlockSpec((1, 1, M), lambda c: (c, 0, 0)),  # per-class scores (lane-major)
                pl.BlockSpec((1, M, 1), lambda c: (c, 0, 0)),  # same scores (sublane-major)
                pl.BlockSpec((1, M), lambda c: (0, 0)),        # labels (shared)
            ],
            out_specs=pl.BlockSpec((1, 1, 128), lambda c: (c, 0, 0)),
        ),
        compiler_params=pltpu.CompilerParams(
            dimension_semantics=("parallel",),                 # classes shardable across cores
            vmem_limit_bytes=32 * 1024 * 1024),
    )(probs_row, probs_col, labels_row)

    return (jnp.sum(out[:, 0, 0]) / num_classes).reshape(1).astype(jnp.float32)


# ---------------- NumPy reference (mirrors the torch/PL semantics) ----------------
# NOTE: torch.argsort's tie ordering is implementation-defined; we fix a *stable* order
# in both the kernel and this reference.

def _pr_curve_np(pred, target_bin):
    order = np.argsort(-pred, kind="stable")
    p = pred[order]
    t = target_bin[order].astype(np.float64)
    dist = np.nonzero(p[1:] != p[:-1])[0]
    thr = np.concatenate([dist, [p.shape[0] - 1]])
    tps = np.cumsum(t)[thr]
    fps = 1 + thr - tps
    precision = tps / (tps + fps)
    recall = tps / tps[-1]
    last = np.nonzero(tps == tps[-1])[0][0]
    precision = np.concatenate([precision[: last + 1][::-1], [1.0]])
    recall = np.concatenate([recall[: last + 1][::-1], [0.0]])
    return precision, recall


def _auc_np(x, y):
    order = np.argsort(x, kind="stable")
    x, y = x[order], y[order]
    return float(np.sum((x[1:] - x[:-1]) * (y[1:] + y[:-1]) * 0.5))


def _reference(logits, labels, num_classes):
    lg = np.asarray(logits, np.float32)
    e = np.exp(lg - lg.max(axis=1, keepdims=True))
    probs = e / e.sum(axis=1, keepdims=True)
    lbl = np.asarray(labels)
    total = 0.0
    for c in range(num_classes):
        p_, r_ = _pr_curve_np(np.asarray(probs[:, c], np.float64),
                              (lbl == c).astype(np.int64))
        total += _auc_np(p_, r_)
    return np.array([total / num_classes], np.float32)


if __name__ == "__main__":
    # MultiAUPRC has no learnable parameters (only num_classes), so nothing to initialize.
    key = jax.random.PRNGKey(0)
    N, C = 64, 8
    k1, k2 = jax.random.split(key)
    logits = jax.random.normal(k1, (N, C), jnp.float32) * 2.0
    labels = jax.random.randint(k2, (N,), 0, C, dtype=jnp.int32)
    # guarantee every class appears at least once (avoids the degenerate NaN-recall case)
    labels = labels.at[:C].set(jnp.arange(C, dtype=jnp.int32))

    result = jax.block_until_ready(multi_auprc(logits, labels, C))

    ref = _reference(np.asarray(logits), np.asarray(labels), C)
    np.testing.assert_allclose(np.asarray(result), ref, rtol=1e-4, atol=1e-5)
    print("KERNEL_OK")
</pallas_src>

<mosaic_0001>
module attributes {stable_mosaic.version = 11 : i64} {
  func.func @kernel(%arg0: i32, %arg1: memref<1x1x128xf32, #tpu.memory_space<vmem>>, %arg2: memref<1x128x1xf32, #tpu.memory_space<vmem>>, %arg3: memref<1x128xi32, #tpu.memory_space<vmem>>, %arg4: memref<1x1x128xf32, #tpu.memory_space<vmem>>) attributes {dimension_semantics = [#tpu.dimension_semantics<parallel>], iteration_bounds = array<i64: 8>, scalar_prefetch = 0 : i64, scratch_operands = 0 : i64, tpu.core_type = #tpu.core_type<tc>, window_params = [{transform_indices = @transform_0, window_bounds = array<i64: 1, 1, 128>}, {transform_indices = @transform_1, window_bounds = array<i64: 1, 128, 1>}, {pipeline_mode = #tpu.pipeline_mode<synchronous>, transform_indices = @transform_2, window_bounds = array<i64: 1, 128>}, {transform_indices = @transform_3, window_bounds = array<i64: 1, 1, 128>}]} {
    %c0 = arith.constant 0 : index
    %c0_0 = arith.constant 0 : index
    %c0_1 = arith.constant 0 : index
    %0 = vector.load %arg1[%c0, %c0_0, %c0_1] : memref<1x1x128xf32, #tpu.memory_space<vmem>>, vector<1x1x128xf32>
    %1 = vector.shape_cast %0 : vector<1x1x128xf32> to vector<1x128xf32>
    %c0_2 = arith.constant 0 : index
    %c0_3 = arith.constant 0 : index
    %c0_4 = arith.constant 0 : index
    %2 = vector.load %arg2[%c0_2, %c0_3, %c0_4] : memref<1x128x1xf32, #tpu.memory_space<vmem>>, vector<1x128x1xf32>
    %3 = vector.shape_cast %2 : vector<1x128x1xf32> to vector<128x1xf32>
    %c0_5 = arith.constant 0 : index
    %c0_6 = arith.constant 0 : index
    %4 = vector.load %arg3[%c0_5, %c0_6] : memref<1x128xi32, #tpu.memory_space<vmem>>, vector<1x128xi32>
    %5 = vector.broadcast %arg0 : i32 to vector<1x128xi32>
    %6 = arith.cmpi eq, %4, %5 : vector<1x128xi32>
    %cst = arith.constant 1.000000e+00 : f32
    %cst_7 = arith.constant 0.000000e+00 : f32
    %7 = vector.broadcast %cst : f32 to vector<1x128xf32>
    %8 = vector.broadcast %cst_7 : f32 to vector<1x128xf32>
    %9 = arith.select %6, %7, %8 : vector<1x128xi1>, vector<1x128xf32>
    %10 = tpu.iota {dimensions = array<i32: 1>} : vector<1x128xi32>
    %11 = tpu.iota {dimensions = array<i32: 0>} : vector<128x128xi32>
    %12 = tpu.iota {dimensions = array<i32: 1>} : vector<128x128xi32>
    %13 = vector.broadcast %3 : vector<128x1xf32> to vector<128x128xf32>
    %14 = vector.broadcast %1 : vector<1x128xf32> to vector<128x128xf32>
    %15 = arith.cmpf ogt, %13, %14 : vector<128x128xf32>
    %16 = vector.broadcast %3 : vector<128x1xf32> to vector<128x128xf32>
    %17 = vector.broadcast %1 : vector<1x128xf32> to vector<128x128xf32>
    %18 = arith.cmpf oeq, %16, %17 : vector<128x128xf32>
    %19 = arith.cmpi slt, %11, %12 : vector<128x128xi32>
    %20 = arith.andi %18, %19 : vector<128x128xi1>
    %21 = arith.ori %15, %20 : vector<128x128xi1>
    %cst_8 = arith.constant 1.000000e+00 : f32
    %cst_9 = arith.constant 0.000000e+00 : f32
    %22 = vector.broadcast %cst_8 : f32 to vector<128x128xf32>
    %23 = vector.broadcast %cst_9 : f32 to vector<128x128xf32>
    %24 = arith.select %21, %22, %23 : vector<128x128xi1>, vector<128x128xf32>
    %25 = tpu.iota {dimensions = array<i32: 0>} : vector<8x128xi32>
    %c0_i32 = arith.constant 0 : i32
    %26 = vector.broadcast %c0_i32 : i32 to vector<8x128xi32>
    %27 = arith.cmpi eq, %25, %26 : vector<8x128xi32>
    %c1_i32 = arith.constant 1 : i32
    %28 = vector.broadcast %c1_i32 : i32 to vector<8x128xi32>
    %29 = arith.cmpi eq, %25, %28 : vector<8x128xi32>
    %cst_10 = arith.constant 0.000000e+00 : f32
    %30 = vector.shape_cast %9 : vector<1x128xf32> to vector<1x128xf32>
    %31 = vector.broadcast %30 : vector<1x128xf32> to vector<8x128xf32>
    %32 = vector.broadcast %cst_10 : f32 to vector<8x128xf32>
    %33 = arith.select %29, %31, %32 : vector<8x128xi1>, vector<8x128xf32>
    %cst_11 = arith.constant 1.000000e+00 : f32
    %34 = vector.broadcast %cst_11 : f32 to vector<8x128xf32>
    %35 = arith.select %27, %34, %33 : vector<8x128xi1>, vector<8x128xf32>
    %cst_12 = arith.constant dense<0.000000e+00> : vector<8x128xf32>
    %36 = tpu.matmul %35, %24, %cst_12 {dimension_numbers = #tpu.dot_dimension_numbers<[1], [0], [0], [1], [0, 0, 1, 1], [], []>} : vector<8x128xf32>, vector<128x128xf32>, vector<8x128xf32> -> vector<8x128xf32>
    %37 = vector.extract_strided_slice %36 {offsets = [0, 0], sizes = [1, 128], strides = [1, 1]} : vector<8x128xf32> to vector<1x128xf32>
    %38 = vector.extract_strided_slice %36 {offsets = [1, 0], sizes = [1, 128], strides = [1, 1]} : vector<8x128xf32> to vector<1x128xf32>
    %39 = arith.addf %38, %9 : vector<1x128xf32>
    %40 = arith.cmpi sgt, %11, %12 : vector<128x128xi32>
    %41 = arith.andi %18, %40 : vector<128x128xi1>
    %cst_13 = arith.constant 1.000000e+00 : f32
    %cst_14 = arith.constant 0.000000e+00 : f32
    %42 = vector.broadcast %cst_13 : f32 to vector<128x128xf32>
    %43 = vector.broadcast %cst_14 : f32 to vector<128x128xf32>
    %44 = arith.select %41, %42, %43 : vector<128x128xi1>, vector<128x128xf32>
    %cst_15 = arith.constant dense<0.000000e+00> : vector<128xf32>
    %45 = vector.multi_reduction <add>, %44, %cst_15 [0] : vector<128x128xf32> to vector<128xf32>
    %46 = vector.shape_cast %45 : vector<128xf32> to vector<1x128xf32>
    %cst_16 = arith.constant 0.000000e+00 : f32
    %47 = vector.broadcast %cst_16 : f32 to vector<1x128xf32>
    %48 = arith.cmpf oeq, %46, %47 : vector<1x128xf32>
    %cst_17 = arith.constant dense<0.000000e+00> : vector<1xf32>
    %49 = vector.multi_reduction <add>, %9, %cst_17 [1] : vector<1x128xf32> to vector<1xf32>
    %50 = vector.shape_cast %49 : vector<1xf32> to vector<1x1xf32>
    %cst_18 = arith.constant 1.000000e+00 : f32
    %51 = vector.broadcast %cst_18 : f32 to vector<1x128xf32>
    %52 = arith.addf %37, %51 : vector<1x128xf32>
    %53 = arith.divf %39, %52 : vector<1x128xf32>
    %54 = vector.broadcast %50 : vector<1x1xf32> to vector<1x128xf32>
    %55 = arith.divf %39, %54 : vector<1x128xf32>
    %56 = vector.broadcast %50 : vector<1x1xf32> to vector<1x128xf32>
    %57 = arith.cmpf oeq, %39, %56 : vector<1x128xf32>
    %58 = arith.andi %48, %57 : vector<1x128xi1>
    %cst_19 = arith.constant 1.280000e+02 : f32
    %59 = vector.broadcast %cst_19 : f32 to vector<1x128xf32>
    %60 = arith.select %58, %37, %59 : vector<1x128xi1>, vector<1x128xf32>
    %cst_20 = arith.constant dense<0x7F800000> : vector<1xf32>
    %61 = vector.multi_reduction <minimumf>, %60, %cst_20 [1] : vector<1x128xf32> to vector<1xf32>
    %62 = vector.shape_cast %61 : vector<1xf32> to vector<1x1xf32>
    %63 = vector.broadcast %62 : vector<1x1xf32> to vector<1x128xf32>
    %64 = arith.cmpf ole, %37, %63 : vector<1x128xf32>
    %65 = arith.andi %48, %64 : vector<1x128xi1>
    %c127_i32 = arith.constant 127 : i32
    %66 = vector.broadcast %c127_i32 : i32 to vector<1x128xi32>
    %67 = arith.cmpi eq, %10, %66 : vector<1x128xi32>
    %cst_21 = arith.constant 2.000000e+00 : f32
    %68 = vector.broadcast %cst_21 : f32 to vector<1x128xf32>
    %69 = arith.select %65, %53, %68 : vector<1x128xi1>, vector<1x128xf32>
    %cst_22 = arith.constant 1.000000e+00 : f32
    %70 = vector.broadcast %cst_22 : f32 to vector<1x128xf32>
    %71 = arith.select %67, %70, %69 : vector<1x128xi1>, vector<1x128xf32>
    %cst_23 = arith.constant 0.000000e+00 : f32
    %72 = vector.broadcast %cst_23 : f32 to vector<1x128xf32>
    %73 = arith.select %65, %55, %72 : vector<1x128xi1>, vector<1x128xf32>
    %cst_24 = arith.constant 0.000000e+00 : f32
    %74 = vector.broadcast %cst_24 : f32 to vector<1x128xf32>
    %75 = arith.select %67, %74, %73 : vector<1x128xi1>, vector<1x128xf32>
    %cst_25 = arith.constant -1.000000e+00 : f32
    %76 = vector.broadcast %cst_25 : f32 to vector<1x128xf32>
    %77 = arith.select %67, %76, %37 : vector<1x128xi1>, vector<1x128xf32>
    %78 = arith.cmpi eq, %11, %12 : vector<128x128xi32>
    %cst_26 = arith.constant 0.000000e+00 : f32
    %79 = vector.shape_cast %71 : vector<1x128xf32> to vector<1x128xf32>
    %80 = vector.broadcast %79 : vector<1x128xf32> to vector<128x128xf32>
    %81 = vector.broadcast %cst_26 : f32 to vector<128x128xf32>
    %82 = arith.select %78, %80, %81 : vector<128x128xi1>, vector<128x128xf32>
    %cst_27 = arith.constant dense<0.000000e+00> : vector<128xf32>
    %83 = vector.multi_reduction <add>, %82, %cst_27 [1] : vector<128x128xf32> to vector<128xf32>
    %84 = vector.shape_cast %83 : vector<128xf32> to vector<128x1xf32>
    %cst_28 = arith.constant 0.000000e+00 : f32
    %85 = vector.shape_cast %77 : vector<1x128xf32> to vector<1x128xf32>
    %86 = vector.broadcast %85 : vector<1x128xf32> to vector<128x128xf32>
    %87 = vector.broadcast %cst_28 : f32 to vector<128x128xf32>
    %88 = arith.select %78, %86, %87 : vector<128x128xi1>, vector<128x128xf32>
    %cst_29 = arith.constant dense<0.000000e+00> : vector<128xf32>
    %89 = vector.multi_reduction <add>, %88, %cst_29 [1] : vector<128x128xf32> to vector<128xf32>
    %90 = vector.shape_cast %89 : vector<128xf32> to vector<128x1xf32>
    %91 = vector.broadcast %84 : vector<128x1xf32> to vector<128x128xf32>
    %92 = vector.broadcast %71 : vector<1x128xf32> to vector<128x128xf32>
    %93 = arith.cmpf ogt, %91, %92 : vector<128x128xf32>
    %94 = vector.broadcast %84 : vector<128x1xf32> to vector<128x128xf32>
    %95 = vector.broadcast %71 : vector<1x128xf32> to vector<128x128xf32>
    %96 = arith.cmpf oeq, %94, %95 : vector<128x128xf32>
    %97 = vector.broadcast %90 : vector<128x1xf32> to vector<128x128xf32>
    %98 = vector.broadcast %77 : vector<1x128xf32> to vector<128x128xf32>
    %99 = arith.cmpf olt, %97, %98 : vector<128x128xf32>
    %100 = arith.andi %96, %99 : vector<128x128xi1>
    %101 = arith.ori %93, %100 : vector<128x128xi1>
    %cst_30 = arith.constant dense<true> : vector<128x128xi1>
    %102 = arith.xori %101, %cst_30 : vector<128x128xi1>
    %103 = arith.cmpi ne, %11, %12 : vector<128x128xi32>
    %104 = arith.andi %102, %103 : vector<128x128xi1>
    %cst_31 = arith.constant 1.000000e+30 : f32
    %105 = vector.shape_cast %84 : vector<128x1xf32> to vector<128x1xf32>
    %106 = vector.broadcast %105 : vector<128x1xf32> to vector<128x128xf32>
    %107 = vector.broadcast %cst_31 : f32 to vector<128x128xf32>
    %108 = arith.select %101, %106, %107 : vector<128x128xi1>, vector<128x128xf32>
    %cst_32 = arith.constant dense<0x7F800000> : vector<128xf32>
    %109 = vector.multi_reduction <minimumf>, %108, %cst_32 [0] : vector<128x128xf32> to vector<128xf32>
    %110 = vector.shape_cast %109 : vector<128xf32> to vector<1x128xf32>
    %cst_33 = arith.constant -1.000000e+30 : f32
    %111 = vector.shape_cast %84 : vector<128x1xf32> to vector<128x1xf32>
    %112 = vector.broadcast %111 : vector<128x1xf32> to vector<128x128xf32>
    %113 = vector.broadcast %cst_33 : f32 to vector<128x128xf32>
    %114 = arith.select %104, %112, %113 : vector<128x128xi1>, vector<128x128xf32>
    %cst_34 = arith.constant dense<0xFF800000> : vector<128xf32>
    %115 = vector.multi_reduction <maximumf>, %114, %cst_34 [0] : vector<128x128xf32> to vector<128xf32>
    %116 = vector.shape_cast %115 : vector<128xf32> to vector<1x128xf32>
    %cst_35 = arith.constant 5.000000e+29 : f32
    %117 = vector.broadcast %cst_35 : f32 to vector<1x128xf32>
    %118 = arith.cmpf ogt, %110, %117 : vector<1x128xf32>
    %119 = arith.select %118, %71, %110 : vector<1x128xi1>, vector<1x128xf32>
    %cst_36 = arith.constant -5.000000e+29 : f32
    %120 = vector.broadcast %cst_36 : f32 to vector<1x128xf32>
    %121 = arith.cmpf olt, %116, %120 : vector<1x128xf32>
    %122 = arith.select %121, %71, %116 : vector<1x128xi1>, vector<1x128xf32>
    %123 = arith.subf %119, %122 : vector<1x128xf32>
    %124 = arith.mulf %75, %123 : vector<1x128xf32>
    %cst_37 = arith.constant dense<0.000000e+00> : vector<1xf32>
    %125 = vector.multi_reduction <add>, %124, %cst_37 [1] : vector<1x128xf32> to vector<1xf32>
    %126 = vector.shape_cast %125 : vector<1xf32> to vector<1x1xf32>
    %cst_38 = arith.constant 5.000000e-01 : f32
    %127 = vector.broadcast %cst_38 : f32 to vector<1x1xf32>
    %128 = arith.mulf %127, %126 : vector<1x1xf32>
    %129 = vector.shape_cast %128 : vector<1x1xf32> to vector<1x1x1xf32>
    %130 = vector.shape_cast %129 : vector<1x1x1xf32> to vector<1x1x1xf32>
    %131 = vector.broadcast %130 : vector<1x1x1xf32> to vector<1x1x128xf32>
    %c0_39 = arith.constant 0 : index
    %c0_40 = arith.constant 0 : index
    %c0_41 = arith.constant 0 : index
    %132 = vector.load %arg4[%c0_39, %c0_40, %c0_41] : memref<1x1x128xf32, #tpu.memory_space<vmem>>, vector<1x1x128xf32>
    tpu.vector_store %arg4[%c0_39, %c0_40, %c0_41], %131 {strides = array<i32>} : memref<1x1x128xf32, #tpu.memory_space<vmem>>, vector<1x1x128xf32>,
    return
  }
  func.func @transform_0(%arg0: i32) -> (i32, i32, i32) {
    %c0_i32 = arith.constant 0 : i32
    %c0_i32_0 = arith.constant 0 : i32
    %c0_i32_1 = arith.constant 0 : i32
    return %arg0, %c0_i32, %c0_i32_0 : i32, i32, i32
  }
  func.func @transform_1(%arg0: i32) -> (i32, i32, i32) {
    %c0_i32 = arith.constant 0 : i32
    %c0_i32_0 = arith.constant 0 : i32
    %c0_i32_1 = arith.constant 0 : i32
    return %arg0, %c0_i32, %c0_i32_0 : i32, i32, i32
  }
  func.func @transform_2(%arg0: i32) -> (i32, i32) {
    %c0_i32 = arith.constant 0 : i32
    %c0_i32_0 = arith.constant 0 : i32
    %c0_i32_1 = arith.constant 0 : i32
    return %c0_i32, %c0_i32_0 : i32, i32
  }
  func.func @transform_3(%arg0: i32) -> (i32, i32, i32) {
    %c0_i32 = arith.constant 0 : i32
    %c0_i32_0 = arith.constant 0 : i32
    %c0_i32_1 = arith.constant 0 : i32
    return %arg0, %c0_i32, %c0_i32_0 : i32, i32, i32
  }
}

</mosaic_0001>

<llo_original>
// kernel: tpu_custom_call.1
$region0: #{tpu_custom_call.1}
  #allocation0 [shape = 'u32[]', space=smem, size = 0x4, offset = 0x4, fixed_abs, tag = 'smem constant byte address 0x4 - core index']
  #allocation1 [shape = 'u32[72,128]{1,0:T(1,128)}', space=vmem, size = 0x9000, scoped, tag = 'internal scratch']
  %s0 = inlined_call_operand.vmem [shape: f32[8,1,128], index: 0, kind: input, shape index: {}]
  %s1 = inlined_call_operand.vmem [shape: f32[8,128,1], index: 1, kind: input, shape index: {}]
  %s2 = inlined_call_operand.vmem [shape: s32[1,128], index: 2, kind: input, shape index: {}]
  %s3 = inlined_call_operand.hbm [shape: f32[8,1,128], index: 3, kind: output, shape index: {}]
  %s4 = sld [smem:[#allocation0]]
  $region45: #{tpu_custom_call.1} parent=0
    _
  %s6 = ssub.s32 1, %s4
  %s7 = scalar_select 0, %s6, %s4
  $region1: #{tpu_custom_call.1} parent=0
    #allocation2 [shape = 'u8[1024]{0}', space=vmem, size = 0x400, scoped, tag = 'output window, operand 0']
    #allocation3 [shape = 's32[2]{0}', space=sflag, size = 0x8, scoped, tag = 'scoped memory for tpu_custom_call.1']
    %8 = vsyncpa [#allocation3], 0
    %s9 = scalar_lea.sflag [#allocation3], 1
    %10 = vsyncpa %s9, 0
    loop: start=0, step=1, limit=10
    $region2: #{tpu_custom_call.1} parent=1 // loop_pre_header
      _
    $region3: #{tpu_custom_call.1} parent=1 // loop_header
      %s12 = sphi 0, %s16
      %p13 = scmp.ge.s32.totalorder %s12, 10
      %s22 = sphi 0, %s24
      %s25 = sphi 0, %s22
      %s26 = sphi 0, %s25
      %s42 = sphi 0, %s26
      %s48 = sphi 0, %s50
      %s51 = sphi 0, %s48
      %s52 = sphi 0, %s51
      %s68 = sphi 0, %s52
      %s72 = sphi 0, %s72
      %s74 = sphi 0, %s72
      %s75 = sphi 0, %s74
      %s89 = sphi 0, %s75
      %s95 = sphi 0, %s97
      %s98 = sphi 0, %s95
      %s99 = sphi 0, %s98
      %s115 = sphi 0, %s99
    $region4: #{tpu_custom_call.1} parent=1 // loop_header_branch
      %15 = sbr.rel (%p13) target = $region8
    $region5: #{tpu_custom_call.1} parent=1 // loop_body
      %s17 = ssub.s32 %s12, 1
      %s18 = ssub.s32 %s12, 2
      %s19 = sadd.s32 %s12, 1
      %s20 = ssub.s32 %s12, %s19
      %p21 = scmp.eq.s32.totalorder %s20, 0
      %s23 = sadd.s32 %s22, 1
      %s24 = scalar_select %p21, %s22, %s23
      %p27 = pneg %p21
      %p28 = scmp.eq.s32.totalorder %s12, 7
      %p29 = por %p27, %p28
      %p30 = scmp.ne.s32.totalorder %s22, %s25
      %p31 = scmp.eq.s32.totalorder %s12, 0
      %p32 = por %p30, %p31
      %p33 = scmp.ne.s32.totalorder %s22, %s25
      %p34 = scmp.eq.s32.totalorder %s17, 7
      %p35 = por %p33, %p34
      %p36 = scmp.ne.s32.totalorder %s25, %s26
      %p37 = scmp.eq.s32.totalorder %s17, 0
      %p38 = por %p36, %p37
      %p39 = scmp.ne.s32.totalorder %s25, %s26
      %p40 = scmp.eq.s32.totalorder %s18, 7
      %p41 = por %p39, %p40
      %p43 = scmp.ne.s32.totalorder %s26, %s42
      %p44 = scmp.eq.s32.totalorder %s18, 0
      %p45 = por %p43, %p44
      %s46 = ssub.s32 %s12, %s19
      %p47 = scmp.eq.s32.totalorder %s46, 0
      %s49 = sadd.s32 %s48, 1
      %s50 = scalar_select %p47, %s48, %s49
      %p53 = pneg %p47
      %p54 = scmp.eq.s32.totalorder %s12, 7
      %p55 = por %p53, %p54
      %p56 = scmp.ne.s32.totalorder %s48, %s51
      %p57 = scmp.eq.s32.totalorder %s12, 0
      %p58 = por %p56, %p57
      %p59 = scmp.ne.s32.totalorder %s48, %s51
      %p60 = scmp.eq.s32.totalorder %s17, 7
      %p61 = por %p59, %p60
      %p62 = scmp.ne.s32.totalorder %s51, %s52
      %p63 = scmp.eq.s32.totalorder %s17, 0
      %p64 = por %p62, %p63
      %p65 = scmp.ne.s32.totalorder %s51, %s52
      %p66 = scmp.eq.s32.totalorder %s18, 7
      %p67 = por %p65, %p66
      %p69 = scmp.ne.s32.totalorder %s52, %s68
      %p70 = scmp.eq.s32.totalorder %s18, 0
      %p71 = por %p69, %p70
      %s73 = sadd.s32 %s72, 1
      %p76 = scmp.eq.s32.totalorder %s12, 7
      %p77 = scmp.ne.s32.totalorder %s72, %s74
      %p78 = scmp.eq.s32.totalorder %s12, 0
      %p79 = por %p77, %p78
      %p80 = scmp.ne.s32.totalorder %s72, %s74
      %p81 = scmp.eq.s32.totalorder %s17, 7
      %p82 = por %p80, %p81
      %p83 = scmp.ne.s32.totalorder %s74, %s75
      %p84 = scmp.eq.s32.totalorder %s17, 0
      %p85 = por %p83, %p84
      %p86 = scmp.ne.s32.totalorder %s74, %s75
      %p87 = scmp.eq.s32.totalorder %s18, 7
      %p88 = por %p86, %p87
      %p90 = scmp.ne.s32.totalorder %s75, %s89
      %p91 = scmp.eq.s32.totalorder %s18, 0
      %p92 = por %p90, %p91
      %s93 = ssub.s32 %s12, %s19
      %p94 = scmp.eq.s32.totalorder %s93, 0
      %s96 = sadd.s32 %s95, 1
      %s97 = scalar_select %p94, %s95, %s96
      %p100 = pneg %p94
      %p101 = scmp.eq.s32.totalorder %s12, 7
      %p102 = por %p100, %p101
      %p103 = scmp.ne.s32.totalorder %s95, %s98
      %p104 = scmp.eq.s32.totalorder %s12, 0
      %p105 = por %p103, %p104
      %p106 = scmp.ne.s32.totalorder %s95, %s98
      %p107 = scmp.eq.s32.totalorder %s17, 7
      %p108 = por %p106, %p107
      %p109 = scmp.ne.s32.totalorder %s98, %s99
      %p110 = scmp.eq.s32.totalorder %s17, 0
      %p111 = por %p109, %p110
      %p112 = scmp.ne.s32.totalorder %s98, %s99
      %p113 = scmp.eq.s32.totalorder %s18, 7
      %p114 = por %p112, %p113
      %p116 = scmp.ne.s32.totalorder %s99, %s115
      %p117 = scmp.eq.s32.totalorder %s18, 0
      %p118 = por %p116, %p117
      %p119 = scmp.le.s32.totalorder 1, %s12
      %p120 = scmp.lt.s32.totalorder %s12, 9
      %p121 = pnand %p119, %p120
      %p122 = pneg %p121
      // Predicated region
      $region9: #{tpu_custom_call.1} parent=5 // pred_check
        _
      $region10: #{tpu_custom_call.1} parent=5 // pred_check_branch
        %124 = sbr.rel (%p121) target = $region12
      $region11: #{tpu_custom_call.1} parent=5 // pred_region
        %s125 = ssub.s32 %s12, 1
        // Predicated region
        $region13: #{tpu_custom_call.1} parent=11 // pred_check
          %p126 = pneg %p85
        $region14: #{tpu_custom_call.1} parent=11 // pred_check_branch
          %128 = sbr.rel (%p126) target = $region16
        $region15: #{tpu_custom_call.1} parent=11 // pred_region
          _
        $region16: #{tpu_custom_call.1} parent=11 // pred_fallthru
          _
      $region12: #{tpu_custom_call.1} parent=5 // pred_fallthru
        _
      %p129 = scmp.lt.s32.totalorder %s12, 8
      // Predicated region
      $region17: #{tpu_custom_call.1} parent=5 // pred_check
        %p130 = pneg %p129
      $region18: #{tpu_custom_call.1} parent=5 // pred_check_branch
        %132 = sbr.rel (%p130) target = $region20
      $region19: #{tpu_custom_call.1} parent=5 // pred_region
        // Predicated region
        $region21: #{tpu_custom_call.1} parent=19 // pred_check
          %p133 = pneg %p32
        $region22: #{tpu_custom_call.1} parent=19 // pred_check_branch
          %135 = sbr.rel (%p133) target = $region24
        $region23: #{tpu_custom_call.1} parent=19 // pred_region
          %p136 = scmp.lt.s32.totalorder %s12, 7
          %s137 = scalar_select %p136, %s12, 7
          %s138 = scalar_lea.vmem %s0, %s137
        $region24: #{tpu_custom_call.1} parent=19 // pred_fallthru
          _
        // Predicated region
        $region25: #{tpu_custom_call.1} parent=19 // pred_check
          %p139 = pneg %p58
        $region26: #{tpu_custom_call.1} parent=19 // pred_check_branch
          %141 = sbr.rel (%p139) target = $region28
        $region27: #{tpu_custom_call.1} parent=19 // pred_region
          %p142 = scmp.lt.s32.totalorder %s12, 7
          %s143 = scalar_select %p142, %s12, 7
          %s144 = smul.addr %s143, 16
          %s145 = smul.addr %s144, 8
          %s146 = scalar_lea.vmem %s1, %s145
        $region28: #{tpu_custom_call.1} parent=19 // pred_fallthru
          _
      $region20: #{tpu_custom_call.1} parent=5 // pred_fallthru
        _
      %p147 = scmp.le.s32.totalorder 1, %s12
      %p148 = scmp.lt.s32.totalorder %s12, 9
      %p149 = pnand %p147, %p148
      %p150 = pneg %p149
      // Predicated region
      $region29: #{tpu_custom_call.1} parent=5 // pred_check
        _
      $region30: #{tpu_custom_call.1} parent=5 // pred_check_branch
        %152 = sbr.rel (%p149) target = $region32
      $region31: #{tpu_custom_call.1} parent=5 // pred_region
        %s153 = ssub.s32 %s12, 1
        %p154 = scmp.lt.s32.totalorder %s17, 7
        %s155 = scalar_select %p154, %s17, 7
        %s156 = scalar_lea.vmem %s0, %s155
        %p157 = pneg %p38
        %p158 = pneg %p35
        %p159 = scmp.lt.s32.totalorder %s17, 7
        %s160 = scalar_select %p159, %s17, 7
        %s161 = smul.addr %s160, 16
        %s162 = smul.addr %s161, 8
        %s163 = scalar_lea.vmem %s1, %s162
        %p164 = pneg %p64
        %p165 = pneg %p61
        %p166 = pneg %p85
        %p167 = pneg %p82
        %p168 = pneg %p111
        %p169 = pneg %p108
        %s170 = sand.u32 %s98, 1
        %s171 = scalar_lea.sflag [#allocation3], %s170
        %s172 = sand.u32 %s98, 1
        %s173 = scalar_lea.vmem [#allocation2], %s172
        %p174 = scmp.lt.s32.totalorder %s17, 7
        %s175 = scalar_select %p174, %s17, 7
        %s176 = scalar_lea.vmem %s0, %s175
        %p177 = scmp.lt.s32.totalorder %s17, 7
        %s178 = scalar_select %p177, %s17, 7
        %s179 = smul.addr %s178, 16
        %s180 = smul.addr %s179, 8
        %s181 = scalar_lea.vmem %s1, %s180
        %v182 = vld [vmem:[%s176] sm:$0x1]
        %v183 = vld [vmem:[%s181] sm:$0xff]
        %v184 = vld [vmem:[%s181 + $0x8] sm:$0xff]
        %v185 = vld [vmem:[%s181 + $0x10] sm:$0xff]
        %v186 = vld [vmem:[%s181 + $0x18] sm:$0xff]
        %v187 = vld [vmem:[%s181 + $0x20] sm:$0xff]
        %v188 = vld [vmem:[%s181 + $0x28] sm:$0xff]
        %v189 = vld [vmem:[%s181 + $0x30] sm:$0xff]
        %v190 = vld [vmem:[%s181 + $0x38] sm:$0xff]
        %v191 = vld [vmem:[%s181 + $0x40] sm:$0xff]
        %v192 = vld [vmem:[%s181 + $0x48] sm:$0xff]
        %v193 = vld [vmem:[%s181 + $0x50] sm:$0xff]
        %v194 = vld [vmem:[%s181 + $0x58] sm:$0xff]
        %v195 = vld [vmem:[%s181 + $0x60] sm:$0xff]
        %v196 = vld [vmem:[%s181 + $0x68] sm:$0xff]
        %v197 = vld [vmem:[%s181 + $0x70] sm:$0xff]
        %v198 = vld [vmem:[%s181 + $0x78] sm:$0xff]
        %v199 = vld [vmem:[%s2] sm:$0x1]
        %v200 = vstv %s17
        %vm201 = vcmp.eq.s32.totalorder %v199, %v200
        %v202 = vsel %vm201, 1.0, 0.0
        %v203 = vlaneseq
        %v204 = vand.u32 %v203, 127
        %v205 = vlaneseq
        %v206 = vshrl.u32 %v205, 7
        %v207 = vadd.s32 %v206, 8
        %v208 = vadd.s32 %v206, 16
        %v209 = vadd.s32 %v206, 24
        %v210 = vadd.s32 %v206, 32
        %v211 = vadd.s32 %v206, 40
        %v212 = vadd.s32 %v206, 48
        %v213 = vadd.s32 %v206, 56
        %v214 = vadd.s32 %v206, 64
        %v215 = vadd.s32 %v206, 72
        %v216 = vadd.s32 %v206, 80
        %v217 = vadd.s32 %v206, 88
        %v218 = vadd.s32 %v206, 96
        %v219 = vadd.s32 %v206, 104
        %v220 = vadd.s32 %v206, 112
        %v221 = vadd.s32 %v206, 120
        %223 = vset.pattern.permute.xlu0 0
        %224 = vperm.xlu0 %223, %v183
        %v225 = vpop.permute.xlu0 %224
        %228 = vset.pattern.permute.xlu0 0
        %229 = vperm.xlu0 %228, %v184
        %v230 = vpop.permute.xlu0 %229
        %233 = vset.pattern.permute.xlu0 0
        %234 = vperm.xlu0 %233, %v185
        %v235 = vpop.permute.xlu0 %234
        %238 = vset.pattern.permute.xlu0 0
        %239 = vperm.xlu0 %238, %v186
        %v240 = vpop.permute.xlu0 %239
        %243 = vset.pattern.permute.xlu0 0
        %244 = vperm.xlu0 %243, %v187
        %v245 = vpop.permute.xlu0 %244
        %248 = vset.pattern.permute.xlu0 0
        %249 = vperm.xlu0 %248, %v188
        %v250 = vpop.permute.xlu0 %249
        %253 = vset.pattern.permute.xlu0 0
        %254 = vperm.xlu0 %253, %v189
        %v255 = vpop.permute.xlu0 %254
        %258 = vset.pattern.permute.xlu0 0
        %259 = vperm.xlu0 %258, %v190
        %v260 = vpop.permute.xlu0 %259
        %263 = vset.pattern.permute.xlu0 0
        %264 = vperm.xlu0 %263, %v191
        %v265 = vpop.permute.xlu0 %264
        %268 = vset.pattern.permute.xlu0 0
        %269 = vperm.xlu0 %268, %v192
        %v270 = vpop.permute.xlu0 %269
        %273 = vset.pattern.permute.xlu0 0
        %274 = vperm.xlu0 %273, %v193
        %v275 = vpop.permute.xlu0 %274
        %278 = vset.pattern.permute.xlu0 0
        %279 = vperm.xlu0 %278, %v194
        %v280 = vpop.permute.xlu0 %279
        %283 = vset.pattern.permute.xlu0 0
        %284 = vperm.xlu0 %283, %v195
        %v285 = vpop.permute.xlu0 %284
        %288 = vset.pattern.permute.xlu0 0
        %289 = vperm.xlu0 %288, %v196
        %v290 = vpop.permute.xlu0 %289
        %293 = vset.pattern.permute.xlu0 0
        %294 = vperm.xlu0 %293, %v197
        %v295 = vpop.permute.xlu0 %294
        %298 = vset.pattern.permute.xlu0 0
        %299 = vperm.xlu0 %298, %v198
        %v300 = vpop.permute.xlu0 %299
        %v303 = vperm.slane %v182, 0
        %vm305 = vcmp.gt.f32.partialorder %v225, %v303
        %vm306 = vcmp.gt.f32.partialorder %v230, %v303
        %vm307 = vcmp.gt.f32.partialorder %v235, %v303
        %vm308 = vcmp.gt.f32.partialorder %v240, %v303
        %vm309 = vcmp.gt.f32.partialorder %v245, %v303
        %vm310 = vcmp.gt.f32.partialorder %v250, %v303
        %vm311 = vcmp.gt.f32.partialorder %v255, %v303
        %vm312 = vcmp.gt.f32.partialorder %v260, %v303
        %vm313 = vcmp.gt.f32.partialorder %v265, %v303
        %vm314 = vcmp.gt.f32.partialorder %v270, %v303
        %vm315 = vcmp.gt.f32.partialorder %v275, %v303
        %vm316 = vcmp.gt.f32.partialorder %v280, %v303
        %vm317 = vcmp.gt.f32.partialorder %v285, %v303
        %vm318 = vcmp.gt.f32.partialorder %v290, %v303
        %vm319 = vcmp.gt.f32.partialorder %v295, %v303
        %vm320 = vcmp.gt.f32.partialorder %v300, %v303
        %vm321 = vcmp.eq.f32.partialorder %v225, %v303
        %vm322 = vcmp.eq.f32.partialorder %v230, %v303
        %vm323 = vcmp.eq.f32.partialorder %v235, %v303
        %vm324 = vcmp.eq.f32.partialorder %v240, %v303
        %vm325 = vcmp.eq.f32.partialorder %v245, %v303
        %vm326 = vcmp.eq.f32.partialorder %v250, %v303
        %vm327 = vcmp.eq.f32.partialorder %v255, %v303
        %vm328 = vcmp.eq.f32.partialorder %v260, %v303
        %vm329 = vcmp.eq.f32.partialorder %v265, %v303
        %vm330 = vcmp.eq.f32.partialorder %v270, %v303
        %vm331 = vcmp.eq.f32.partialorder %v275, %v303
        %vm332 = vcmp.eq.f32.partialorder %v280, %v303
        %vm333 = vcmp.eq.f32.partialorder %v285, %v303
        %vm334 = vcmp.eq.f32.partialorder %v290, %v303
        %vm335 = vcmp.eq.f32.partialorder %v295, %v303
        %vm336 = vcmp.eq.f32.partialorder %v300, %v303
        %vm337 = vcmp.lt.s32.totalorder %v206, %v204
        %vm338 = vcmp.lt.s32.totalorder %v207, %v204
        %vm339 = vcmp.lt.s32.totalorder %v208, %v204
        %vm340 = vcmp.lt.s32.totalorder %v209, %v204
        %vm341 = vcmp.lt.s32.totalorder %v210, %v204
        %vm342 = vcmp.lt.s32.totalorder %v211, %v204
        %vm343 = vcmp.lt.s32.totalorder %v212, %v204
        %vm344 = vcmp.lt.s32.totalorder %v213, %v204
        %vm345 = vcmp.lt.s32.totalorder %v214, %v204
        %vm346 = vcmp.lt.s32.totalorder %v215, %v204
        %vm347 = vcmp.lt.s32.totalorder %v216, %v204
        %vm348 = vcmp.lt.s32.totalorder %v217, %v204
        %vm349 = vcmp.lt.s32.totalorder %v218, %v204
        %vm350 = vcmp.lt.s32.totalorder %v219, %v204
        %vm351 = vcmp.lt.s32.totalorder %v220, %v204
        %vm352 = vcmp.lt.s32.totalorder %v221, %v204
        %vm353 = vmand %vm321, %vm337
        %vm354 = vmand %vm322, %vm338
        %vm355 = vmand %vm323, %vm339
        %vm356 = vmand %vm324, %vm340
        %vm357 = vmand %vm325, %vm341
        %vm358 = vmand %vm326, %vm342
        %vm359 = vmand %vm327, %vm343
        %vm360 = vmand %vm328, %vm344
        %vm361 = vmand %vm329, %vm345
        %vm362 = vmand %vm330, %vm346
        %vm363 = vmand %vm331, %vm347
        %vm364 = vmand %vm332, %vm348
        %vm365 = vmand %vm333, %vm349
        %vm366 = vmand %vm334, %vm350
        %vm367 = vmand %vm335, %vm351
        %vm368 = vmand %vm336, %vm352
        %vm369 = vmor %vm305, %vm353
        %vm370 = vmor %vm306, %vm354
        %vm371 = vmor %vm307, %vm355
        %vm372 = vmor %vm308, %vm356
        %vm373 = vmor %vm309, %vm357
        %vm374 = vmor %vm310, %vm358
        %vm375 = vmor %vm311, %vm359
        %vm376 = vmor %vm312, %vm360
        %vm377 = vmor %vm313, %vm361
        %vm378 = vmor %vm314, %vm362
        %vm379 = vmor %vm315, %vm363
        %vm380 = vmor %vm316, %vm364
        %vm381 = vmor %vm317, %vm365
        %vm382 = vmor %vm318, %vm366
        %vm383 = vmor %vm319, %vm367
        %vm384 = vmor %vm320, %vm368
        %v385 = vsel %vm369, 1.0, 0.0
        %v386 = vsel %vm370, 1.0, 0.0
        %v387 = vsel %vm371, 1.0, 0.0
        %v388 = vsel %vm372, 1.0, 0.0
        %v389 = vsel %vm373, 1.0, 0.0
        %v390 = vsel %vm374, 1.0, 0.0
        %v391 = vsel %vm375, 1.0, 0.0
        %v392 = vsel %vm376, 1.0, 0.0
        %v393 = vsel %vm377, 1.0, 0.0
        %v394 = vsel %vm378, 1.0, 0.0
        %v395 = vsel %vm379, 1.0, 0.0
        %v396 = vsel %vm380, 1.0, 0.0
        %v397 = vsel %vm381, 1.0, 0.0
        %v398 = vsel %vm382, 1.0, 0.0
        %v399 = vsel %vm383, 1.0, 0.0
        %v400 = vsel %vm384, 1.0, 0.0
        %vm401 = vcmp.eq.s32.totalorder %v206, 0
        %vm402 = vcmp.eq.s32.totalorder %v206, 1
        %v404 = vperm.slane %v202, 0
        %v406 = vsel %vm402, %v404, 0.0
        %v407 = vsel %vm401, 1.0, %v406
        %408 = vmatpush.msra.mxu0 %v400
        %409 = vmatpush.msra.mxu0 %v399
        %410 = vmatpush.msra.mxu0 %v398
        %411 = vmatpush.msra.mxu0 %v397
        %412 = vmatpush.msra.mxu0 %v396
        %413 = vmatpush.msra.mxu0 %v395
        %414 = vmatpush.msra.mxu0 %v394
        %415 = vmatpush.msra.mxu0 %v393
        %416 = vmatpush.msra.mxu0 %v392
        %417 = vmatpush.msra.mxu0 %v391
        %418 = vmatpush.msra.mxu0 %v390
        %419 = vmatpush.msra.mxu0 %v389
        %420 = vmatpush.msra.mxu0 %v388
        %421 = vmatpush.msra.mxu0 %v387
        %422 = vmatpush.msra.mxu0 %v386
        %423 = vmatpush.msra.mxu0 %v385
        %424 = vmatmul.f32.gmra.mxu0 %v407
        %v425 = vpop.f32.mrf.mxu0
        %v426 = vadd.f32 0.0, %v425
        %427 = vdwg.mxu0
        %v428 = vadd.f32 %v426, %v404
        %vm429 = vcmp.gt.s32.totalorder %v206, %v204
        %vm430 = vcmp.gt.s32.totalorder %v207, %v204
        %vm431 = vcmp.gt.s32.totalorder %v208, %v204
        %vm432 = vcmp.gt.s32.totalorder %v209, %v204
        %vm433 = vcmp.gt.s32.totalorder %v210, %v204
        %vm434 = vcmp.gt.s32.totalorder %v211, %v204
        %vm435 = vcmp.gt.s32.totalorder %v212, %v204
        %vm436 = vcmp.gt.s32.totalorder %v213, %v204
        %vm437 = vcmp.gt.s32.totalorder %v214, %v204
        %vm438 = vcmp.gt.s32.totalorder %v215, %v204
        %vm439 = vcmp.gt.s32.totalorder %v216, %v204
        %vm440 = vcmp.gt.s32.totalorder %v217, %v204
        %vm441 = vcmp.gt.s32.totalorder %v218, %v204
        %vm442 = vcmp.gt.s32.totalorder %v219, %v204
        %vm443 = vcmp.gt.s32.totalorder %v220, %v204
        %vm444 = vcmp.gt.s32.totalorder %v221, %v204
        %vm445 = vmand %vm321, %vm429
        %vm446 = vmand %vm322, %vm430
        %vm447 = vmand %vm323, %vm431
        %vm448 = vmand %vm324, %vm432
        %vm449 = vmand %vm325, %vm433
        %vm450 = vmand %vm326, %vm434
        %vm451 = vmand %vm327, %vm435
        %vm452 = vmand %vm328, %vm436
        %vm453 = vmand %vm329, %vm437
        %vm454 = vmand %vm330, %vm438
        %vm455 = vmand %vm331, %vm439
        %vm456 = vmand %vm332, %vm440
        %vm457 = vmand %vm333, %vm441
        %vm458 = vmand %vm334, %vm442
        %vm459 = vmand %vm335, %vm443
        %vm460 = vmand %vm336, %vm444
        %v461 = vsel %vm445, 1.0, 0.0
        %v462 = vsel %vm446, 1.0, 0.0
        %v463 = vsel %vm447, 1.0, 0.0
        %v464 = vsel %vm448, 1.0, 0.0
        %v465 = vsel %vm449, 1.0, 0.0
        %v466 = vsel %vm450, 1.0, 0.0
        %v467 = vsel %vm451, 1.0, 0.0
        %v468 = vsel %vm452, 1.0, 0.0
        %v469 = vsel %vm453, 1.0, 0.0
        %v470 = vsel %vm454, 1.0, 0.0
        %v471 = vsel %vm455, 1.0, 0.0
        %v472 = vsel %vm456, 1.0, 0.0
        %v473 = vsel %vm457, 1.0, 0.0
        %v474 = vsel %vm458, 1.0, 0.0
        %v475 = vsel %vm459, 1.0, 0.0
        %v476 = vsel %vm460, 1.0, 0.0
        %v477 = vadd.f32 %v461, %v462
        %v478 = vadd.f32 %v477, %v463
        %v479 = vadd.f32 %v478, %v464
        %v480 = vadd.f32 %v479, %v465
        %v481 = vadd.f32 %v480, %v466
        %v482 = vadd.f32 %v481, %v467
        %v483 = vadd.f32 %v482, %v468
        %v484 = vadd.f32 %v483, %v469
        %v485 = vadd.f32 %v484, %v470
        %v486 = vadd.f32 %v485, %v471
        %v487 = vadd.f32 %v486, %v472
        %v488 = vadd.f32 %v487, %v473
        %v489 = vadd.f32 %v488, %v474
        %v490 = vadd.f32 %v489, %v475
        %v491 = vadd.f32 %v490, %v476
        %v492 = vrot.slane %v491, 4
        %v493 = vadd.f32 %v491, %v492
        %v494 = vrot.slane %v493, 2
        %v495 = vadd.f32 %v493, %v494
        %v496 = vrot.slane %v495, 1
        %v497 = vadd.f32 %v495, %v496
        %vm498 = vcmp.eq.f32.partialorder %v497, 0.0
        %vm499 = vcmask 1040384
        %v500 = vsel %vm499, %v202, 0.0
        %501 = vadd.xlane.f32.xlu0 %v500
        %v502 = vpop.xlane.xlu0 %501
        %v503 = vadd.f32 %v426, 1.0
        %v505 = vrot.slane %v503, 7
        %v507 = vrcp.pop %v505
        %v508 = vmul.f32 %v505, %v507
        %v509 = vsub.f32 1.0, %v508
        %v510 = vmul.f32 %v507, %v509
        %v511 = vadd.f32 %v507, %v510
        %vm512 = vweird.f32 %v505
        %vm513 = vweird.f32 %v507
        %vm514 = vmor %vm512, %vm513
        %v515 = vsel %vm514, %v507, %v511
        %v516 = vand.u32 2147483647, %v505
        %vm517 = vcmp.eq.f32.partialorder %v516, 8.507059e+37
        %v518 = vand.u32 %v505, 2147483648
        %v519 = vor.u32 1.1754944e-38, %v518
        %v520 = vsel %vm517, %v519, %v515
        %v521 = vmul.f32 %v428, %v520
        %v523 = vrot.slane %v502, 7
        %v525 = vrcp.pop %v523
        %v526 = vmul.f32 %v523, %v525
        %v527 = vsub.f32 1.0, %v526
        %v528 = vmul.f32 %v525, %v527
        %v529 = vadd.f32 %v525, %v528
        %vm530 = vweird.f32 %v523
        %vm531 = vweird.f32 %v525
        %vm532 = vmor %vm530, %vm531
        %v533 = vsel %vm532, %v525, %v529
        %v534 = vand.u32 2147483647, %v523
        %vm535 = vcmp.eq.f32.partialorder %v534, 8.507059e+37
        %v536 = vand.u32 %v523, 2147483648
        %v537 = vor.u32 1.1754944e-38, %v536
        %v538 = vsel %vm535, %v537, %v533
        %v539 = vmul.f32 %v428, %v538
        %vm540 = vcmp.eq.f32.partialorder %v428, %v523
        %vm541 = vmand %vm498, %vm540
        %v543 = vrot.slane %v426, 7
        %v545 = vsel %vm541, %v543, 128.0
        %vm546 = vcmask 1041409
        %v547 = vsel %vm546, %v545, inf
        %548 = vmin.xlane.f32.xlu0 %v547
        %v549 = vpop.xlane.xlu0 %548
        %v551 = vrot.slane %v549, 1
        %vm553 = vcmp.le.f32.partialorder %v426, %v551
        %vm554 = vmand %vm498, %vm553
        %vm555 = vcmp.eq.s32.totalorder %v204, 127
        %v557 = vrot.slane %v521, 1
        %v559 = vsel %vm554, %v557, 2.0
        %v560 = vsel %vm555, 1.0, %v559
        %v562 = vrot.slane %v539, 1
        %v564 = vsel %vm554, %v562, 0.0
        %v565 = vsel %vm555, 0.0, %v564
        %v566 = vsel %vm555, -1.0, %v426
        %vm567 = vcmp.eq.s32.totalorder %v206, %v204
        %vm568 = vcmp.eq.s32.totalorder %v207, %v204
        %vm569 = vcmp.eq.s32.totalorder %v208, %v204
        %vm570 = vcmp.eq.s32.totalorder %v209, %v204
        %vm571 = vcmp.eq.s32.totalorder %v210, %v204
        %vm572 = vcmp.eq.s32.totalorder %v211, %v204
        %vm573 = vcmp.eq.s32.totalorder %v212, %v204
        %vm574 = vcmp.eq.s32.totalorder %v213, %v204
        %vm575 = vcmp.eq.s32.totalorder %v214, %v204
        %vm576 = vcmp.eq.s32.totalorder %v215, %v204
        %vm577 = vcmp.eq.s32.totalorder %v216, %v204
        %vm578 = vcmp.eq.s32.totalorder %v217, %v204
        %vm579 = vcmp.eq.s32.totalorder %v218, %v204
        %vm580 = vcmp.eq.s32.totalorder %v219, %v204
        %vm581 = vcmp.eq.s32.totalorder %v220, %v204
        %vm582 = vcmp.eq.s32.totalorder %v221, %v204
        %v583 = vperm.slane %v560, 0
        %v584 = vsel %vm567, %v583, 0.0
        %v585 = vsel %vm568, %v583, 0.0
        %v586 = vsel %vm569, %v583, 0.0
        %v587 = vsel %vm570, %v583, 0.0
        %v588 = vsel %vm571, %v583, 0.0
        %v589 = vsel %vm572, %v583, 0.0
        %v590 = vsel %vm573, %v583, 0.0
        %v591 = vsel %vm574, %v583, 0.0
        %v592 = vsel %vm575, %v583, 0.0
        %v593 = vsel %vm576, %v583, 0.0
        %v594 = vsel %vm577, %v583, 0.0
        %v595 = vsel %vm578, %v583, 0.0
        %v596 = vsel %vm579, %v583, 0.0
        %v597 = vsel %vm580, %v583, 0.0
        %v598 = vsel %vm581, %v583, 0.0
        %v599 = vsel %vm582, %v583, 0.0
        %600 = vadd.xlane.f32.xlu0 %v584
        %v601 = vpop.xlane.xlu0 %600
        %602 = vadd.xlane.f32.xlu0 %v585
        %v603 = vpop.xlane.xlu0 %602
        %604 = vadd.xlane.f32.xlu0 %v586
        %v605 = vpop.xlane.xlu0 %604
        %606 = vadd.xlane.f32.xlu0 %v587
        %v607 = vpop.xlane.xlu0 %606
        %608 = vadd.xlane.f32.xlu0 %v588
        %v609 = vpop.xlane.xlu0 %608
        %610 = vadd.xlane.f32.xlu0 %v589
        %v611 = vpop.xlane.xlu0 %610
        %612 = vadd.xlane.f32.xlu0 %v590
        %v613 = vpop.xlane.xlu0 %612
        %614 = vadd.xlane.f32.xlu0 %v591
        %v615 = vpop.xlane.xlu0 %614
        %616 = vadd.xlane.f32.xlu0 %v592
        %v617 = vpop.xlane.xlu0 %616
        %618 = vadd.xlane.f32.xlu0 %v593
        %v619 = vpop.xlane.xlu0 %618
        %620 = vadd.xlane.f32.xlu0 %v594
        %v621 = vpop.xlane.xlu0 %620
        %622 = vadd.xlane.f32.xlu0 %v595
        %v623 = vpop.xlane.xlu0 %622
        %624 = vadd.xlane.f32.xlu0 %v596
        %v625 = vpop.xlane.xlu0 %624
        %626 = vadd.xlane.f32.xlu0 %v597
        %v627 = vpop.xlane.xlu0 %626
        %628 = vadd.xlane.f32.xlu0 %v598
        %v629 = vpop.xlane.xlu0 %628
        %630 = vadd.xlane.f32.xlu0 %v599
        %v631 = vpop.xlane.xlu0 %630
        %v632 = vperm.slane %v566, 0
        %v633 = vsel %vm567, %v632, 0.0
        %v634 = vsel %vm568, %v632, 0.0
        %v635 = vsel %vm569, %v632, 0.0
        %v636 = vsel %vm570, %v632, 0.0
        %v637 = vsel %vm571, %v632, 0.0
        %v638 = vsel %vm572, %v632, 0.0
        %v639 = vsel %vm573, %v632, 0.0
        %v640 = vsel %vm574, %v632, 0.0
        %v641 = vsel %vm575, %v632, 0.0
        %v642 = vsel %vm576, %v632, 0.0
        %v643 = vsel %vm577, %v632, 0.0
        %v644 = vsel %vm578, %v632, 0.0
        %v645 = vsel %vm579, %v632, 0.0
        %v646 = vsel %vm580, %v632, 0.0
        %v647 = vsel %vm581, %v632, 0.0
        %v648 = vsel %vm582, %v632, 0.0
        %649 = vadd.xlane.f32.xlu0 %v633
        %v650 = vpop.xlane.xlu0 %649
        %651 = vadd.xlane.f32.xlu0 %v634
        %v652 = vpop.xlane.xlu0 %651
        %653 = vadd.xlane.f32.xlu0 %v635
        %v654 = vpop.xlane.xlu0 %653
        %655 = vadd.xlane.f32.xlu0 %v636
        %v656 = vpop.xlane.xlu0 %655
        %657 = vadd.xlane.f32.xlu0 %v637
        %v658 = vpop.xlane.xlu0 %657
        %659 = vadd.xlane.f32.xlu0 %v638
        %v660 = vpop.xlane.xlu0 %659
        %661 = vadd.xlane.f32.xlu0 %v639
        %v662 = vpop.xlane.xlu0 %661
        %663 = vadd.xlane.f32.xlu0 %v640
        %v664 = vpop.xlane.xlu0 %663
        %665 = vadd.xlane.f32.xlu0 %v641
        %v666 = vpop.xlane.xlu0 %665
        %667 = vadd.xlane.f32.xlu0 %v642
        %v668 = vpop.xlane.xlu0 %667
        %669 = vadd.xlane.f32.xlu0 %v643
        %v670 = vpop.xlane.xlu0 %669
        %671 = vadd.xlane.f32.xlu0 %v644
        %v672 = vpop.xlane.xlu0 %671
        %673 = vadd.xlane.f32.xlu0 %v645
        %v674 = vpop.xlane.xlu0 %673
        %675 = vadd.xlane.f32.xlu0 %v646
        %v676 = vpop.xlane.xlu0 %675
        %677 = vadd.xlane.f32.xlu0 %v647
        %v678 = vpop.xlane.xlu0 %677
        %679 = vadd.xlane.f32.xlu0 %v648
        %v680 = vpop.xlane.xlu0 %679
        %vm681 = vcmp.gt.f32.partialorder %v601, %v583
        %vm682 = vcmp.gt.f32.partialorder %v603, %v583
        %vm683 = vcmp.gt.f32.partialorder %v605, %v583
        %vm684 = vcmp.gt.f32.partialorder %v607, %v583
        %vm685 = vcmp.gt.f32.partialorder %v609, %v583
        %vm686 = vcmp.gt.f32.partialorder %v611, %v583
        %vm687 = vcmp.gt.f32.partialorder %v613, %v583
        %vm688 = vcmp.gt.f32.partialorder %v615, %v583
        %vm689 = vcmp.gt.f32.partialorder %v617, %v583
        %vm690 = vcmp.gt.f32.partialorder %v619, %v583
        %vm691 = vcmp.gt.f32.partialorder %v621, %v583
        %vm692 = vcmp.gt.f32.partialorder %v623, %v583
        %vm693 = vcmp.gt.f32.partialorder %v625, %v583
        %vm694 = vcmp.gt.f32.partialorder %v627, %v583
        %vm695 = vcmp.gt.f32.partialorder %v629, %v583
        %vm696 = vcmp.gt.f32.partialorder %v631, %v583
        %vm697 = vcmp.eq.f32.partialorder %v601, %v583
        %vm698 = vcmp.eq.f32.partialorder %v603, %v583
        %vm699 = vcmp.eq.f32.partialorder %v605, %v583
        %vm700 = vcmp.eq.f32.partialorder %v607, %v583
        %vm701 = vcmp.eq.f32.partialorder %v609, %v583
        %vm702 = vcmp.eq.f32.partialorder %v611, %v583
        %vm703 = vcmp.eq.f32.partialorder %v613, %v583
        %vm704 = vcmp.eq.f32.partialorder %v615, %v583
        %vm705 = vcmp.eq.f32.partialorder %v617, %v583
        %vm706 = vcmp.eq.f32.partialorder %v619, %v583
        %vm707 = vcmp.eq.f32.partialorder %v621, %v583
        %vm708 = vcmp.eq.f32.partialorder %v623, %v583
        %vm709 = vcmp.eq.f32.partialorder %v625, %v583
        %vm710 = vcmp.eq.f32.partialorder %v627, %v583
        %vm711 = vcmp.eq.f32.partialorder %v629, %v583
        %vm712 = vcmp.eq.f32.partialorder %v631, %v583
        %vm713 = vcmp.lt.f32.partialorder %v650, %v632
        %vm714 = vcmp.lt.f32.partialorder %v652, %v632
        %vm715 = vcmp.lt.f32.partialorder %v654, %v632
        %vm716 = vcmp.lt.f32.partialorder %v656, %v632
        %vm717 = vcmp.lt.f32.partialorder %v658, %v632
        %vm718 = vcmp.lt.f32.partialorder %v660, %v632
        %vm719 = vcmp.lt.f32.partialorder %v662, %v632
        %vm720 = vcmp.lt.f32.partialorder %v664, %v632
        %vm721 = vcmp.lt.f32.partialorder %v666, %v632
        %vm722 = vcmp.lt.f32.partialorder %v668, %v632
        %vm723 = vcmp.lt.f32.partialorder %v670, %v632
        %vm724 = vcmp.lt.f32.partialorder %v672, %v632
        %vm725 = vcmp.lt.f32.partialorder %v674, %v632
        %vm726 = vcmp.lt.f32.partialorder %v676, %v632
        %vm727 = vcmp.lt.f32.partialorder %v678, %v632
        %vm728 = vcmp.lt.f32.partialorder %v680, %v632
        %vm729 = vmand %vm697, %vm713
        %vm730 = vmand %vm698, %vm714
        %vm731 = vmand %vm699, %vm715
        %vm732 = vmand %vm700, %vm716
        %vm733 = vmand %vm701, %vm717
        %vm734 = vmand %vm702, %vm718
        %vm735 = vmand %vm703, %vm719
        %vm736 = vmand %vm704, %vm720
        %vm737 = vmand %vm705, %vm721
        %vm738 = vmand %vm706, %vm722
        %vm739 = vmand %vm707, %vm723
        %vm740 = vmand %vm708, %vm724
        %vm741 = vmand %vm709, %vm725
        %vm742 = vmand %vm710, %vm726
        %vm743 = vmand %vm711, %vm727
        %vm744 = vmand %vm712, %vm728
        %vm745 = vmor %vm681, %vm729
        %vm746 = vmor %vm682, %vm730
        %vm747 = vmor %vm683, %vm731
        %vm748 = vmor %vm684, %vm732
        %vm749 = vmor %vm685, %vm733
        %vm750 = vmor %vm686, %vm734
        %vm751 = vmor %vm687, %vm735
        %vm752 = vmor %vm688, %vm736
        %vm753 = vmor %vm689, %vm737
        %vm754 = vmor %vm690, %vm738
        %vm755 = vmor %vm691, %vm739
        %vm756 = vmor %vm692, %vm740
        %vm757 = vmor %vm693, %vm741
        %vm758 = vmor %vm694, %vm742
        %vm759 = vmor %vm695, %vm743
        %vm760 = vmor %vm696, %vm744
        %vm761 = vmxor %vm745, 1
        %vm762 = vmxor %vm746, 1
        %vm763 = vmxor %vm747, 1
        %vm764 = vmxor %vm748, 1
        %vm765 = vmxor %vm749, 1
        %vm766 = vmxor %vm750, 1
        %vm767 = vmxor %vm751, 1
        %vm768 = vmxor %vm752, 1
        %vm769 = vmxor %vm753, 1
        %vm770 = vmxor %vm754, 1
        %vm771 = vmxor %vm755, 1
        %vm772 = vmxor %vm756, 1
        %vm773 = vmxor %vm757, 1
        %vm774 = vmxor %vm758, 1
        %vm775 = vmxor %vm759, 1
        %vm776 = vmxor %vm760, 1
        %vm777 = vcmp.ne.s32.totalorder %v206, %v204
        %vm778 = vcmp.ne.s32.totalorder %v207, %v204
        %vm779 = vcmp.ne.s32.totalorder %v208, %v204
        %vm780 = vcmp.ne.s32.totalorder %v209, %v204
        %vm781 = vcmp.ne.s32.totalorder %v210, %v204
        %vm782 = vcmp.ne.s32.totalorder %v211, %v204
        %vm783 = vcmp.ne.s32.totalorder %v212, %v204
        %vm784 = vcmp.ne.s32.totalorder %v213, %v204
        %vm785 = vcmp.ne.s32.totalorder %v214, %v204
        %vm786 = vcmp.ne.s32.totalorder %v215, %v204
        %vm787 = vcmp.ne.s32.totalorder %v216, %v204
        %vm788 = vcmp.ne.s32.totalorder %v217, %v204
        %vm789 = vcmp.ne.s32.totalorder %v218, %v204
        %vm790 = vcmp.ne.s32.totalorder %v219, %v204
        %vm791 = vcmp.ne.s32.totalorder %v220, %v204
        %vm792 = vcmp.ne.s32.totalorder %v221, %v204
        %vm793 = vmand %vm761, %vm777
        %vm794 = vmand %vm762, %vm778
        %vm795 = vmand %vm763, %vm779
        %vm796 = vmand %vm764, %vm780
        %vm797 = vmand %vm765, %vm781
        %vm798 = vmand %vm766, %vm782
        %vm799 = vmand %vm767, %vm783
        %vm800 = vmand %vm768, %vm784
        %vm801 = vmand %vm769, %vm785
        %vm802 = vmand %vm770, %vm786
        %vm803 = vmand %vm771, %vm787
        %vm804 = vmand %vm772, %vm788
        %vm805 = vmand %vm773, %vm789
        %vm806 = vmand %vm774, %vm790
        %vm807 = vmand %vm775, %vm791
        %vm808 = vmand %vm776, %vm792
        %v809 = vsel %vm745, %v601, 1e+30
        %v810 = vsel %vm746, %v603, 1e+30
        %v811 = vsel %vm747, %v605, 1e+30
        %v812 = vsel %vm748, %v607, 1e+30
        %v813 = vsel %vm749, %v609, 1e+30
        %v814 = vsel %vm750, %v611, 1e+30
        %v815 = vsel %vm751, %v613, 1e+30
        %v816 = vsel %vm752, %v615, 1e+30
        %v817 = vsel %vm753, %v617, 1e+30
        %v818 = vsel %vm754, %v619, 1e+30
        %v819 = vsel %vm755, %v621, 1e+30
        %v820 = vsel %vm756, %v623, 1e+30
        %v821 = vsel %vm757, %v625, 1e+30
        %v822 = vsel %vm758, %v627, 1e+30
        %v823 = vsel %vm759, %v629, 1e+30
        %v824 = vsel %vm760, %v631, 1e+30
        %v825 = vmin.f32 %v809, %v813
        %v826 = vmin.f32 %v810, %v814
        %v827 = vmin.f32 %v811, %v815
        %v828 = vmin.f32 %v812, %v816
        %v829 = vmin.f32 %v825, %v817
        %v830 = vmin.f32 %v826, %v818
        %v831 = vmin.f32 %v827, %v819
        %v832 = vmin.f32 %v828, %v820
        %v833 = vmin.f32 %v829, %v821
        %v834 = vmin.f32 %v830, %v822
        %v835 = vmin.f32 %v831, %v823
        %v836 = vmin.f32 %v832, %v824
        %v837 = vmin.f32 %v833, %v834
        %v838 = vmin.f32 %v835, %v836
        %v839 = vmin.f32 %v837, %v838
        %v840 = vrot.slane %v839, 4
        %v841 = vmin.f32 %v839, %v840
        %v842 = vrot.slane %v841, 2
        %v843 = vmin.f32 %v841, %v842
        %v844 = vrot.slane %v843, 1
        %v845 = vmin.f32 %v843, %v844
        %v846 = vsel %vm793, %v601, -1e+30
        %v847 = vsel %vm794, %v603, -1e+30
        %v848 = vsel %vm795, %v605, -1e+30
        %v849 = vsel %vm796, %v607, -1e+30
        %v850 = vsel %vm797, %v609, -1e+30
        %v851 = vsel %vm798, %v611, -1e+30
        %v852 = vsel %vm799, %v613, -1e+30
        %v853 = vsel %vm800, %v615, -1e+30
        %v854 = vsel %vm801, %v617, -1e+30
        %v855 = vsel %vm802, %v619, -1e+30
        %v856 = vsel %vm803, %v621, -1e+30
        %v857 = vsel %vm804, %v623, -1e+30
        %v858 = vsel %vm805, %v625, -1e+30
        %v859 = vsel %vm806, %v627, -1e+30
        %v860 = vsel %vm807, %v629, -1e+30
        %v861 = vsel %vm808, %v631, -1e+30
        %v862 = vmax.f32 %v846, %v850
        %v863 = vmax.f32 %v847, %v851
        %v864 = vmax.f32 %v848, %v852
        %v865 = vmax.f32 %v849, %v853
        %v866 = vmax.f32 %v862, %v854
        %v867 = vmax.f32 %v863, %v855
        %v868 = vmax.f32 %v864, %v856
        %v869 = vmax.f32 %v865, %v857
        %v870 = vmax.f32 %v866, %v858
        %v871 = vmax.f32 %v867, %v859
        %v872 = vmax.f32 %v868, %v860
        %v873 = vmax.f32 %v869, %v861
        %v874 = vmax.f32 %v870, %v871
        %v875 = vmax.f32 %v872, %v873
        %v876 = vmax.f32 %v874, %v875
        %v877 = vrot.slane %v876, 4
        %v878 = vmax.f32 %v876, %v877
        %v879 = vrot.slane %v878, 2
        %v880 = vmax.f32 %v878, %v879
        %v881 = vrot.slane %v880, 1
        %v882 = vmax.f32 %v880, %v881
        %vm883 = vcmp.gt.f32.partialorder %v845, 5e+29
        %v884 = vsel %vm883, %v560, %v845
        %vm885 = vcmp.lt.f32.partialorder %v882, -5e+29
        %v886 = vsel %vm885, %v560, %v882
        %v887 = vsub.f32 %v884, %v886
        %v888 = vmul.f32 %v565, %v887
        %v889 = vsel %vm499, %v888, 0.0
        %890 = vadd.xlane.f32.xlu0 %v889
        %v891 = vpop.xlane.xlu0 %890
        %v892 = vmul.f32 %v891, 0.5
        %893 = vst [vmem:[%s173] sm:$0x1] %v892
        %s894 = sand.u32 %s98, 1
        %s895 = scalar_lea.sflag [#allocation3], %s894
        %s896 = sand.u32 %s98, 1
        %s897 = scalar_lea.vmem [#allocation2], %s896
        // Predicated region
        $region33: #{tpu_custom_call.1} parent=31 // pred_check
          %p898 = pneg %p108
        $region34: #{tpu_custom_call.1} parent=31 // pred_check_branch
          %900 = sbr.rel (%p898) target = $region36
        $region35: #{tpu_custom_call.1} parent=31 // pred_region
          %902 = vsyncadd %s895, 0
          %s903 = scalar_lea.hbm %s3, %s17
          %s905 = sshll.u32 %s897, 4
          %s906 = int_to_ptr.vmem [resolvable:$true] %s905
          %s907 = sshll.u32 %s903, 4
          %s908 = int_to_ptr.hbm [resolvable:$true] %s907
          %910 = dma.vmem_to_hbm [thread:$0]  %s906, 16, %s908, %s895
        $region36: #{tpu_custom_call.1} parent=31 // pred_fallthru
          _
      $region32: #{tpu_custom_call.1} parent=5 // pred_fallthru
        _
      %p911 = scmp.le.s32.totalorder 2, %s12
      // Predicated region
      $region37: #{tpu_custom_call.1} parent=5 // pred_check
        %p912 = pneg %p911
      $region38: #{tpu_custom_call.1} parent=5 // pred_check_branch
        %914 = sbr.rel (%p912) target = $region40
      $region39: #{tpu_custom_call.1} parent=5 // pred_region
        %s915 = ssub.s32 %s12, 2
        // Predicated region
        $region41: #{tpu_custom_call.1} parent=39 // pred_check
          %p916 = pneg %p114
        $region42: #{tpu_custom_call.1} parent=39 // pred_check_branch
          %918 = sbr.rel (%p916) target = $region44
        $region43: #{tpu_custom_call.1} parent=39 // pred_region
          %s919 = sand.u32 %s99, 1
          %s920 = scalar_lea.sflag [#allocation3], %s919
          %s921 = sand.u32 %s99, 1
          %s922 = scalar_lea.vmem [#allocation2], %s921
          %924 = dma.done %s920, 16
        $region44: #{tpu_custom_call.1} parent=39 // pred_fallthru
          _
      $region40: #{tpu_custom_call.1} parent=5 // pred_fallthru
        _
    $region6: #{tpu_custom_call.1} parent=1 // loop_footer
      %s16 = sadd.s32 1, %s12
    $region7: #{tpu_custom_call.1} parent=1 // loop_footer_branch
      %11 = sbr.rel target = $region3
    $region8: #{tpu_custom_call.1} parent=1 // loop_exit
      _
    %925 = vsyncpa [#allocation3], 1
    %s926 = scalar_lea.sflag [#allocation3], 1
    %927 = vsyncpa %s926, 1

</llo_original>
